<compile_context>
chip_gen: v5e
topology: v5e:2x2
jax: 0.10.0
libtpu: 0.0.40
codegen_flags: <defaults>
</compile_context>

<pallas_src>
import jax
import jax.numpy as jnp
from jax.experimental import pallas as pl
from jax.experimental.pallas import tpu as pltpu

STEPS = 18     # input feature dim (== `steps` in the module)
H1 = 32
H2 = 8
OUT = 1

# Packed parameter buffer layout (rows x cols), f32, cols = 32:
#   rows  0:18, cols 0:32 -> W1^T (18, 32)
#   rows 18:50, cols 0: 8 -> W2^T (32,  8)
#   row  50,    cols 0: 8 -> w3 row (8,)
#   row  51,    cols 0:32 -> b1 (32,)
#   row  52,    cols 0: 8 -> b2 (8,)
#   row  53,    col  0    -> b3 scalar
R_W1T = 0
R_W2T = STEPS                 # 18
R_W3 = R_W2T + H1             # 50
R_B1 = R_W3 + 1               # 51
R_B2 = R_B1 + 1               # 52
R_B3 = R_B2 + 1               # 53
PACK_R = 56                   # rounded up to a multiple of 8 sublanes
PACK_C = H1                   # 32 (full-array block, exempt from 128-lane rule)

# Conservative worst-case VMEM bytes per batch row at f32 with 128-lane-padded
# buffers: x block (2 x 512) + h1 (512) + h2 (512) + temps (512) + out (2 x 512).
VMEM_BYTES_PER_ROW = 4096


def _pack_params(params):
    """Pack (out,in)-layout weights + 1-D biases into one (56, 32) f32 buffer."""
    w1, b1, w2, b2, w3, b3 = params
    p = jnp.zeros((PACK_R, PACK_C), jnp.float32)
    p = p.at[R_W1T:R_W1T + STEPS, 0:H1].set(w1.astype(jnp.float32).T)   # (18, 32)
    p = p.at[R_W2T:R_W2T + H1, 0:H2].set(w2.astype(jnp.float32).T)      # (32, 8)
    p = p.at[R_W3, 0:H2].set(w3.astype(jnp.float32)[0])                 # (8,)
    p = p.at[R_B1, 0:H1].set(b1.astype(jnp.float32))                    # (32,)
    p = p.at[R_B2, 0:H2].set(b2.astype(jnp.float32))                    # (8,)
    p = p.at[R_B3, 0].set(b3.astype(jnp.float32)[0])                    # scalar
    return p


def _mlp_kernel(x_ref, p_ref, o_ref):
    # x_ref: (tb, 18) f32 batch-major block.  p_ref: (56, 32) packed params.
    x = x_ref[...]                                    # (tb, 18)

    w1t = p_ref[R_W1T:R_W1T + STEPS, 0:H1]            # (18, 32)
    w2t = p_ref[R_W2T:R_W2T + H1, 0:H2]               # (32, 8)
    w3 = p_ref[R_W3:R_W3 + 1, 0:H2]                   # (1, 8)
    b1 = p_ref[R_B1:R_B1 + 1, 0:H1]                   # (1, 32)
    b2 = p_ref[R_B2:R_B2 + 1, 0:H2]                   # (1, 8)
    b3 = p_ref[R_B3:R_B3 + 1, 0:1]                    # (1, 1)

    # Linear(18->32) + ReLU   (Dropout(0.2) is identity in eval mode)
    h1 = jnp.dot(x, w1t, preferred_element_type=jnp.float32) + b1      # (tb, 32)
    h1 = jnp.maximum(h1, 0.0)

    # Linear(32->8) + ReLU
    h2 = jnp.dot(h1, w2t, preferred_element_type=jnp.float32) + b2     # (tb, 8)
    h2 = jnp.maximum(h2, 0.0)

    # Linear(8->1): VPU broadcast-mul + lane reduce (skip a 99%-padded MXU pass)
    o = jnp.sum(h2 * w3, axis=-1, keepdims=True) + b3                  # (tb, 1)
    o_ref[...] = o.astype(o_ref.dtype)


def _chip_info():
    """Return (physical VMEM bytes per TensorCore, chip has 2 TensorCores)."""
    vmem, dual = 64 << 20, False              # conservative fallback (v7x-sized)
    try:
        kind = (jax.devices()[0].device_kind or "").lower()
        if "v5" in kind or "v6" in kind:
            vmem, dual = 128 << 20, False     # v5e / v6e: 1 TC, 128 MiB VMEM
        elif "7" in kind:
            vmem, dual = 64 << 20, True       # v7x: 2 TCs/chip, 64 MiB VMEM/TC
    except Exception:
        pass
    try:
        cap = int(pltpu.get_tpu_info().vmem_capacity_bytes)
        if cap > 0:
            vmem = min(vmem, cap)
    except Exception:
        pass
    return vmem, dual


def _pick_tb(B, vmem_bytes, dual_core):
    """Biggest batch tile that fits half the physical VMEM; even split on v7x."""
    budget = max(vmem_bytes // 2, 16 << 20)
    cap = (budget // VMEM_BYTES_PER_ROW) // 128 * 128
    cap = max(min(cap, 16384), 512)
    if B <= cap:
        if dual_core and B > 1024:
            # v7x: give both TensorCores work (>=2 steps/core for big batches).
            nsteps = 4 if B >= 8 * 1024 else 2
            return min(cap, ((pl.cdiv(B, nsteps) + 7) // 8) * 8)
        return B                                   # single full-array block
    nsteps = pl.cdiv(B, cap)
    if dual_core and (nsteps % 2):
        nsteps += 1                                # even grid-step count on v7x
    return min(cap, ((pl.cdiv(B, nsteps) + 7) // 8) * 8)


def long_term_discriminator(x, params, *, tb=None):
    """x: (B, STEPS) float32 -> (B, 1) float32 (PyTorch-compatible layout)."""
    B = x.shape[0]
    assert x.shape[1] == STEPS, x.shape
    x = x.astype(jnp.float32)                      # no transpose, no pad
    packed = _pack_params(params)                  # (56, 32)

    vmem_bytes, dual_core = _chip_info()
    if tb is None:
        tb = _pick_tb(B, vmem_bytes, dual_core)
    else:
        tb = int(tb)
        tb = B if tb >= B else max(8, ((tb + 7) // 8) * 8)
    grid = pl.cdiv(B, tb)                          # partial edge block allowed

    vmem_limit = int(min(vmem_bytes - (8 << 20),
                         max(32 << 20, VMEM_BYTES_PER_ROW * tb + (16 << 20))))

    flops = 2 * B * (STEPS * H1 + H1 * H2 + H2 * OUT)
    bytes_accessed = 4 * (B * (STEPS + OUT) + PACK_R * PACK_C)
    cost = pl.CostEstimate(flops=flops, transcendentals=0,
                           bytes_accessed=bytes_accessed)

    out = pl.pallas_call(
        _mlp_kernel,
        out_shape=jax.ShapeDtypeStruct((B, OUT), jnp.float32),
        grid_spec=pltpu.PrefetchScalarGridSpec(
            num_scalar_prefetch=0,
            grid=(grid,),
            in_specs=[
                pl.BlockSpec((tb, STEPS), lambda i: (i, 0)),       # x block
                pl.BlockSpec((PACK_R, PACK_C), lambda i: (0, 0)),  # params (const)
            ],
            out_specs=pl.BlockSpec((tb, OUT), lambda i: (i, 0)),   # (tb, 1)
        ),
        compiler_params=pltpu.CompilerParams(
            dimension_semantics=("parallel",),
            vmem_limit_bytes=vmem_limit,
        ),
        cost_estimate=cost,
    )(x, packed)
    return out


def init_params(key):
    """Mirror layer_init: orthogonal(gain=sqrt(2)) weights (out,in), zero bias."""
    k1, k2, k3 = jax.random.split(key, 3)
    ortho = jax.nn.initializers.orthogonal(scale=2.0 ** 0.5)
    w1 = ortho(k1, (H1, STEPS), jnp.float32)
    b1 = jnp.zeros((H1,), jnp.float32)
    w2 = ortho(k2, (H2, H1), jnp.float32)
    b2 = jnp.zeros((H2,), jnp.float32)
    w3 = ortho(k3, (OUT, H2), jnp.float32)
    b3 = jnp.zeros((OUT,), jnp.float32)
    return (w1, b1, w2, b2, w3, b3)


def reference(x, params):
    w1, b1, w2, b2, w3, b3 = params
    hi = jax.lax.Precision.HIGHEST
    h1 = jnp.maximum(jnp.dot(x, w1.T, precision=hi) + b1, 0.0)
    h2 = jnp.maximum(jnp.dot(h1, w2.T, precision=hi) + b2, 0.0)
    return jnp.dot(h2, w3.T, precision=hi) + b3


if __name__ == "__main__":
    key = jax.random.PRNGKey(0)
    kx, kp, kb = jax.random.split(key, 3)

    params = init_params(kp)
    # layer_init uses zero biases; use small non-zero biases in the check so
    # the in-kernel bias-add path is actually exercised.
    kb1, kb2, kb3 = jax.random.split(kb, 3)
    w1, b1, w2, b2, w3, b3 = params
    params = (w1, 0.1 * jax.random.normal(kb1, b1.shape, jnp.float32),
              w2, 0.1 * jax.random.normal(kb2, b2.shape, jnp.float32),
              w3, 0.1 * jax.random.normal(kb3, b3.shape, jnp.float32))

    fwd = jax.jit(long_term_discriminator, static_argnames=("tb",))
    # (16, None): aligned single-block path; (13, None): odd full-array block;
    # (300, 128): multi-step grid with a partial (masked) edge block.
    for B, tb in ((16, None), (13, None), (300, 128)):
        x = jax.random.normal(kx, (B, STEPS), jnp.float32)
        out = jax.block_until_ready(fwd(x, params, tb=tb))
        ref = reference(x, params)
        assert out.shape == (B, OUT), (out.shape, B)
        assert jnp.allclose(out, ref, atol=1e-5, rtol=1e-5), f"mismatch (B={B}, tb={tb})"

    print("KERNEL_OK")
</pallas_src>

<mosaic_0001>
module attributes {stable_mosaic.version = 11 : i64} {
  func.func @_mlp_kernel(%arg0: i32, %arg1: memref<16x18xf32, #tpu.memory_space<vmem>>, %arg2: memref<56x32xf32, #tpu.memory_space<vmem>>, %arg3: memref<16x1xf32, #tpu.memory_space<vmem>>) attributes {dimension_semantics = [#tpu.dimension_semantics<parallel>], iteration_bounds = array<i64: 1>, scalar_prefetch = 0 : i64, scratch_operands = 0 : i64, tpu.core_type = #tpu.core_type<tc>, window_params = [{transform_indices = @transform_0, window_bounds = array<i64: 16, 18>}, {pipeline_mode = #tpu.pipeline_mode<synchronous>, transform_indices = @transform_1, window_bounds = array<i64: 56, 32>}, {transform_indices = @transform_2, window_bounds = array<i64: 16, 1>}]} {
    %c0 = arith.constant 0 : index
    %c0_0 = arith.constant 0 : index
    %0 = vector.load %arg1[%c0, %c0_0] : memref<16x18xf32, #tpu.memory_space<vmem>>, vector<16x18xf32>
    %c0_1 = arith.constant 0 : index
    %c0_2 = arith.constant 0 : index
    %1 = vector.load %arg2[%c0_1, %c0_2] : memref<56x32xf32, #tpu.memory_space<vmem>>, vector<18x32xf32>
    %c18 = arith.constant 18 : index
    %c0_3 = arith.constant 0 : index
    %2 = vector.load %arg2[%c18, %c0_3] : memref<56x32xf32, #tpu.memory_space<vmem>>, vector<32x8xf32>
    %c50 = arith.constant 50 : index
    %c0_4 = arith.constant 0 : index
    %3 = vector.load %arg2[%c50, %c0_4] : memref<56x32xf32, #tpu.memory_space<vmem>>, vector<1x8xf32>
    %c51 = arith.constant 51 : index
    %c0_5 = arith.constant 0 : index
    %4 = vector.load %arg2[%c51, %c0_5] : memref<56x32xf32, #tpu.memory_space<vmem>>, vector<1x32xf32>
    %c52 = arith.constant 52 : index
    %c0_6 = arith.constant 0 : index
    %5 = vector.load %arg2[%c52, %c0_6] : memref<56x32xf32, #tpu.memory_space<vmem>>, vector<1x8xf32>
    %c53 = arith.constant 53 : index
    %c0_7 = arith.constant 0 : index
    %6 = vector.load %arg2[%c53, %c0_7] : memref<56x32xf32, #tpu.memory_space<vmem>>, vector<1x1xf32>
    %cst = arith.constant dense<0.000000e+00> : vector<16x32xf32>
    %7 = tpu.matmul %0, %1, %cst {dimension_numbers = #tpu.dot_dimension_numbers<[1], [0], [0], [1], [0, 0, 1, 1], [], []>} : vector<16x18xf32>, vector<18x32xf32>, vector<16x32xf32> -> vector<16x32xf32>
    %8 = vector.broadcast %4 : vector<1x32xf32> to vector<16x32xf32>
    %9 = arith.addf %7, %8 : vector<16x32xf32>
    %cst_8 = arith.constant 0.000000e+00 : f32
    %10 = vector.broadcast %cst_8 : f32 to vector<16x32xf32>
    %11 = arith.maximumf %9, %10 : vector<16x32xf32>
    %cst_9 = arith.constant dense<0.000000e+00> : vector<16x8xf32>
    %12 = tpu.matmul %11, %2, %cst_9 {dimension_numbers = #tpu.dot_dimension_numbers<[1], [0], [0], [1], [0, 0, 1, 1], [], []>} : vector<16x32xf32>, vector<32x8xf32>, vector<16x8xf32> -> vector<16x8xf32>
    %13 = vector.broadcast %5 : vector<1x8xf32> to vector<16x8xf32>
    %14 = arith.addf %12, %13 : vector<16x8xf32>
    %cst_10 = arith.constant 0.000000e+00 : f32
    %15 = vector.broadcast %cst_10 : f32 to vector<16x8xf32>
    %16 = arith.maximumf %14, %15 : vector<16x8xf32>
    %17 = vector.broadcast %3 : vector<1x8xf32> to vector<16x8xf32>
    %18 = arith.mulf %16, %17 : vector<16x8xf32>
    %cst_11 = arith.constant dense<0.000000e+00> : vector<16xf32>
    %19 = vector.multi_reduction <add>, %18, %cst_11 [1] : vector<16x8xf32> to vector<16xf32>
    %20 = vector.shape_cast %19 : vector<16xf32> to vector<16x1xf32>
    %21 = vector.broadcast %6 : vector<1x1xf32> to vector<16x1xf32>
    %22 = arith.addf %20, %21 : vector<16x1xf32>
    %c0_12 = arith.constant 0 : index
    %c0_13 = arith.constant 0 : index
    %23 = vector.load %arg3[%c0_12, %c0_13] : memref<16x1xf32, #tpu.memory_space<vmem>>, vector<16x1xf32>
    tpu.vector_store %arg3[%c0_12, %c0_13], %22 {strides = array<i32>} : memref<16x1xf32, #tpu.memory_space<vmem>>, vector<16x1xf32>,
    return
  }
  func.func @transform_0(%arg0: i32) -> (i32, i32) {
    %c0_i32 = arith.constant 0 : i32
    %c0_i32_0 = arith.constant 0 : i32
    return %arg0, %c0_i32 : i32, i32
  }
  func.func @transform_1(%arg0: i32) -> (i32, i32) {
    %c0_i32 = arith.constant 0 : i32
    %c0_i32_0 = arith.constant 0 : i32
    %c0_i32_1 = arith.constant 0 : i32
    return %c0_i32, %c0_i32_0 : i32, i32
  }
  func.func @transform_2(%arg0: i32) -> (i32, i32) {
    %c0_i32 = arith.constant 0 : i32
    %c0_i32_0 = arith.constant 0 : i32
    return %arg0, %c0_i32 : i32, i32
  }
}

</mosaic_0001>

<llo_original>
// kernel: long_term_discriminator.1
$region0: #{long_term_discriminator.1}
  #allocation0 [shape = 'u32[]', space=smem, size = 0x4, offset = 0x4, fixed_abs, tag = 'smem constant byte address 0x4 - core index']
  #allocation1 [shape = 'u32[72,128]{1,0:T(1,128)}', space=vmem, size = 0x9000, scoped, tag = 'internal scratch']
  %s0 = inlined_call_operand.vmem [shape: f32[16,18], index: 0, kind: input, shape index: {}]
  %s1 = inlined_call_operand.vmem [shape: f32[56,32], index: 1, kind: input, shape index: {}]
  %s2 = inlined_call_operand.vmem [shape: f32[16,1], index: 2, kind: output, shape index: {}]
  %s3 = sld [smem:[#allocation0]]
  $region18: #{long_term_discriminator.1} parent=0
    _
  %s5 = ssub.s32 1, %s3
  %s6 = scalar_select 0, %s5, %s3
  // Predicated region
  $region2: #{long_term_discriminator.1} parent=0 // pred_check
    _
  $region3: #{long_term_discriminator.1} parent=0 // pred_check_branch
    %8 = sbr.rel (0) target = $region5
  $region4: #{long_term_discriminator.1} parent=0 // pred_region
    _
  $region5: #{long_term_discriminator.1} parent=0 // pred_fallthru
    _
  // Predicated region
  $region6: #{long_term_discriminator.1} parent=0 // pred_check
    _
  $region7: #{long_term_discriminator.1} parent=0 // pred_check_branch
    %10 = sbr.rel (0) target = $region9
  $region8: #{long_term_discriminator.1} parent=0 // pred_region
    _
  $region9: #{long_term_discriminator.1} parent=0 // pred_fallthru
    _
  %v11 = vld [vmem:[%s0] sm:$0xff]
  %v12 = vld [vmem:[%s0 + $0x8] sm:$0xff]
  %v13 = vld [vmem:[%s1] sm:$0xff]
  %v14 = vld [vmem:[%s1 + $0x8] sm:$0xff]
  %v15 = vld [vmem:[%s1 + $0x10] sm:$0x3]
  %v16 = vld [vmem:[%s1 + $0x12] sm:$0xff]
  %v17 = vld [vmem:[%s1 + $0x1a] sm:$0xff]
  %v18 = vld [vmem:[%s1 + $0x22] sm:$0xff]
  %v19 = vld [vmem:[%s1 + $0x2a] sm:$0xff]
  %v20 = vld [vmem:[%s1 + $0x32] sm:$0x1]
  %v21 = vld [vmem:[%s1 + $0x33] sm:$0x1]
  %v22 = vld [vmem:[%s1 + $0x34] sm:$0x1]
  %v23 = vld [vmem:[%s1 + $0x35] sm:$0x1]
  %v24 = vperm.slane %v21, 0
  %vm25 = vcmask 146432
  %v27 = vsel %vm25, %v11, 0
  %v30 = vsel %vm25, %v12, 0
  %vm32 = vcmask 1041408
  %v34 = vsel %vm32, %v15, 0
  %36 = vmatpush.msra.mxu0 0.0
  %37 = vmatpush.msra.mxu0 0.0
  %38 = vmatpush.msra.mxu0 0.0
  %39 = vmatpush.msra.mxu0 0.0
  %40 = vmatpush.msra.mxu0 0.0
  %41 = vmatpush.msra.mxu0 0.0
  %42 = vmatpush.msra.mxu0 0.0
  %43 = vmatpush.msra.mxu0 0.0
  %44 = vmatpush.msra.mxu0 0.0
  %45 = vmatpush.msra.mxu0 0.0
  %46 = vmatpush.msra.mxu0 0.0
  %47 = vmatpush.msra.mxu0 0.0
  %48 = vmatpush.msra.mxu0 0.0
  %49 = vmatpush.msra.mxu0 %v34
  %50 = vmatpush.msra.mxu0 %v14
  %51 = vmatpush.msra.mxu0 %v13
  %52 = vmatmul.f32.gmra.mxu0 %v27
  %v53 = vpop.f32.mrf.mxu0
  %v54 = vadd.f32 %v24, %v53
  %55 = vmatmul.f32.gmra.mxu0 %v30
  %v56 = vpop.f32.mrf.mxu0
  %v57 = vadd.f32 %v24, %v56
  %58 = vdwg.mxu0
  %v59 = vmax.f32 %v54, 0.0
  %v60 = vmax.f32 %v57, 0.0
  %v61 = vperm.slane %v22, 0
  %vm62 = vcmask 261120
  %v64 = vsel %vm62, %v59, 0
  %v67 = vsel %vm62, %v60, 0
  %69 = vmatpush.msra.mxu0 0.0
  %70 = vmatpush.msra.mxu0 0.0
  %71 = vmatpush.msra.mxu0 0.0
  %72 = vmatpush.msra.mxu0 0.0
  %73 = vmatpush.msra.mxu0 0.0
  %74 = vmatpush.msra.mxu0 0.0
  %75 = vmatpush.msra.mxu0 0.0
  %76 = vmatpush.msra.mxu0 0.0
  %77 = vmatpush.msra.mxu0 0.0
  %78 = vmatpush.msra.mxu0 0.0
  %79 = vmatpush.msra.mxu0 0.0
  %80 = vmatpush.msra.mxu0 0.0
  %81 = vmatpush.msra.mxu0 %v19
  %82 = vmatpush.msra.mxu0 %v18
  %83 = vmatpush.msra.mxu0 %v17
  %84 = vmatpush.msra.mxu0 %v16
  %85 = vmatmul.f32.gmra.mxu0 %v64
  %v86 = vpop.f32.mrf.mxu0
  %v87 = vadd.f32 %v61, %v86
  %88 = vmatmul.f32.gmra.mxu0 %v67
  %v89 = vpop.f32.mrf.mxu0
  %v90 = vadd.f32 %v61, %v89
  %91 = vdwg.mxu0
  %v92 = vmax.f32 %v87, 0.0
  %v93 = vmax.f32 %v90, 0.0
  %v94 = vperm.slane %v20, 0
  %v95 = vmul.f32 %v92, %v94
  %v96 = vmul.f32 %v93, %v94
  %vm97 = vcmask 64512
  %v98 = vsel %vm97, %v95, 0.0
  %99 = vadd.xlane.f32.xlu0 %v98
  %v100 = vpop.xlane.xlu0 %99
  %v101 = vsel %vm97, %v96, 0.0
  %102 = vadd.xlane.f32.xlu0 %v101
  %v103 = vpop.xlane.xlu0 %102
  %v104 = vperm.slane %v23, 0
  %v105 = vadd.f32 %v100, %v104
  %v106 = vadd.f32 %v103, %v104
  %vm107 = vcmask 7168
  %108 = vst.msk [vmem:[%s2] sm:$0xff] %vm107, %v105
  %109 = vst.msk [vmem:[%s2 + $0x8] sm:$0xff] %vm107, %v106
  // Predicated region
  $region10: #{long_term_discriminator.1} parent=0 // pred_check
    _
  $region11: #{long_term_discriminator.1} parent=0 // pred_check_branch
    %111 = sbr.rel (0) target = $region13
  $region12: #{long_term_discriminator.1} parent=0 // pred_region
    _
  $region13: #{long_term_discriminator.1} parent=0 // pred_fallthru
    _
  // Predicated region
  $region14: #{long_term_discriminator.1} parent=0 // pred_check
    _
  $region15: #{long_term_discriminator.1} parent=0 // pred_check_branch
    %113 = sbr.rel (0) target = $region17
  $region16: #{long_term_discriminator.1} parent=0 // pred_region
    _
  $region17: #{long_term_discriminator.1} parent=0 // pred_fallthru
    _

</llo_original>
